<compile_context>
chip_gen: v6e
topology: v6e:2x2x1
jax: 0.10.0
libtpu: 0.0.40
codegen_flags: <defaults>
</compile_context>

<pallas_src>
import jax
import jax.numpy as jnp
from jax.experimental import pallas as pl
from jax.experimental.pallas import tpu as pltpu


def _round_up(x, m):
    return (x + m - 1) // m * m


def _attention_kernel(hidden_ref, query_ref, out_ref):
    # hidden_ref: (TB, S, H), query_ref: (TB, H), out_ref: (TB, H)
    # Per batch slice the hidden tile is (S sublanes, H lanes); every
    # intermediate keeps S on the sublane axis so the softmax weights
    # broadcast along lanes without any XLU transpose.
    h = hidden_ref[...]                                   # (TB, S, H), input dtype
    q = query_ref[...].astype(h.dtype)[:, None, :]        # (TB, 1, H)

    # scores[b, s] = sum_h h[b, s, h] * q[b, h]
    # multiply in the input dtype, accumulate in f32 (lane reduce).
    scores = jnp.sum(h * q, axis=-1, keepdims=True, dtype=jnp.float32)  # (TB, S, 1)

    # Numerically stable softmax over S (the sublane axis).
    m = jnp.max(scores, axis=1, keepdims=True)            # (TB, 1, 1)
    e = jnp.exp(scores - m)                               # (TB, S, 1), f32
    denom = jnp.sum(e, axis=1)                            # (TB, 1),    f32

    # result[b, h] = (1/denom[b]) * sum_s e[b, s] * h[b, s, h]
    # e broadcasts natively along lanes; multiply in input dtype, f32 accumulate.
    w = e.astype(h.dtype)                                 # (TB, S, 1)
    acc = jnp.sum(w * h, axis=1, dtype=jnp.float32)       # (TB, H)

    # Normalization folded into the (TB, H) output scale; reciprocal on EUP.
    inv = pl.reciprocal(denom, approx=True)               # (TB, 1)
    out_ref[...] = (acc * inv).astype(out_ref.dtype)


def _choose_block_b(B, S, H, itemsize):
    """Pick the batch tile.

    Constraints / preferences:
      (a) divides B -> no jnp.pad HBM copy, no ragged tail;
      (b) keeps the 2-D query/output blocks legal: sublane dim is a multiple
          of 8 or the whole batch;
      (c) lane/sublane-PADDED hidden block <= ~2 MiB, so double buffering plus
          the in-kernel f32 temporaries stay far below the 32 MiB scoped-VMEM
          limit (and within v7x's 64 MiB physical VMEM);
      (d) prefer >= 4 grid steps (2 per v7x TensorCore) so the BlockSpec
          pipeline overlaps DMA with compute.
    """
    padded_item = _round_up(S, 8) * _round_up(max(H, 1), 128) * itemsize
    budget = 2 * 1024 * 1024
    legal = [d for d in range(1, B + 1)
             if B % d == 0 and (d % 8 == 0 or d == B) and d * padded_item <= budget]
    if not legal:
        # TODO(synk): if even a single whole-batch block would exceed VMEM,
        # fall back to in-kernel S/H chunking; not reachable at sane shapes.
        return B
    for min_blocks in (4, 2, 1):
        cands = [d for d in legal if B // d >= min_blocks]
        if cands:
            return max(cands)
    return max(legal)


def attention_forward(feature, hidden, *, block_b=None):
    """feature: (B, H, 1), hidden: (B, S, H) -> (B, H)  (matches PyTorch)."""
    B, S, H = hidden.shape
    assert feature.shape == (B, H, 1)

    # Trailing-singleton squeeze is free (no HBM copy) -- unlike the removed pad.
    query = feature.reshape(B, H)

    if block_b is None:
        block_b = _choose_block_b(B, S, H, hidden.dtype.itemsize)
    assert B % block_b == 0, "block_b must divide B (no padding path)"
    num_blocks = B // block_b

    itemsize = hidden.dtype.itemsize
    cost = pl.CostEstimate(
        flops=4 * B * S * H,
        transcendentals=B * S,
        bytes_accessed=(B * S * H + 2 * B * H) * itemsize,
    )

    return pl.pallas_call(
        _attention_kernel,
        out_shape=jax.ShapeDtypeStruct((B, H), hidden.dtype),
        grid_spec=pltpu.PrefetchScalarGridSpec(
            num_scalar_prefetch=0,
            grid=(num_blocks,),
            in_specs=[
                pl.BlockSpec((block_b, S, H), lambda b: (b, 0, 0)),
                pl.BlockSpec((block_b, H), lambda b: (b, 0)),
            ],
            out_specs=pl.BlockSpec((block_b, H), lambda b: (b, 0)),
        ),
        compiler_params=pltpu.CompilerParams(
            dimension_semantics=("parallel",),
            vmem_limit_bytes=32 * 1024 * 1024,
        ),
        cost_estimate=cost,
    )(hidden, query)


def _reference(feature, hidden):
    # pure-JAX mirror of the PyTorch forward, for verification
    ratio = jnp.einsum("bsh,bhk->bsk", hidden, feature)[:, :, 0]   # (B, S)
    ratio = jax.nn.softmax(ratio, axis=1)[:, :, None]              # (B, S, 1)
    result = jnp.einsum("bhs,bsk->bhk",
                        jnp.transpose(hidden, (0, 2, 1)), ratio)   # (B, H, 1)
    return result[:, :, 0]


if __name__ == "__main__":
    key = jax.random.PRNGKey(0)
    k1, k2 = jax.random.split(key)
    B, S, H = 2, 8, 32
    hidden = jax.random.normal(k1, (B, S, H), dtype=jnp.float32)
    feature = jax.random.normal(k2, (B, H, 1), dtype=jnp.float32)

    out = attention_forward(feature, hidden)
    out = jax.block_until_ready(out)

    ref = _reference(feature, hidden)
    assert out.shape == (B, H)
    # approx reciprocal (EUP) slightly loosens tolerance vs an exact divide.
    assert jnp.allclose(out, ref, atol=2e-3, rtol=2e-3), "mismatch vs reference"
    print("KERNEL_OK")
</pallas_src>

<mosaic_0001>
module attributes {stable_mosaic.version = 11 : i64} {
  func.func @_attention_kernel(%arg0: i32, %arg1: memref<2x8x32xf32, #tpu.memory_space<vmem>>, %arg2: memref<2x32xf32, #tpu.memory_space<vmem>>, %arg3: memref<2x32xf32, #tpu.memory_space<vmem>>) attributes {dimension_semantics = [#tpu.dimension_semantics<parallel>], iteration_bounds = array<i64: 1>, scalar_prefetch = 0 : i64, scratch_operands = 0 : i64, tpu.core_type = #tpu.core_type<tc>, window_params = [{transform_indices = @transform_0, window_bounds = array<i64: 2, 8, 32>}, {transform_indices = @transform_1, window_bounds = array<i64: 2, 32>}, {transform_indices = @transform_2, window_bounds = array<i64: 2, 32>}]} {
    %c0 = arith.constant 0 : index
    %c0_0 = arith.constant 0 : index
    %c0_1 = arith.constant 0 : index
    %0 = vector.load %arg1[%c0, %c0_0, %c0_1] : memref<2x8x32xf32, #tpu.memory_space<vmem>>, vector<2x8x32xf32>
    %c0_2 = arith.constant 0 : index
    %c0_3 = arith.constant 0 : index
    %1 = vector.load %arg2[%c0_2, %c0_3] : memref<2x32xf32, #tpu.memory_space<vmem>>, vector<2x32xf32>
    %2 = vector.shape_cast %1 : vector<2x32xf32> to vector<2x1x32xf32>
    %3 = vector.broadcast %2 : vector<2x1x32xf32> to vector<2x8x32xf32>
    %4 = arith.mulf %0, %3 : vector<2x8x32xf32>
    %cst = arith.constant dense<0.000000e+00> : vector<2x8xf32>
    %5 = vector.multi_reduction <add>, %4, %cst [2] : vector<2x8x32xf32> to vector<2x8xf32>
    %6 = vector.shape_cast %5 : vector<2x8xf32> to vector<2x8x1xf32>
    %cst_4 = arith.constant dense<0xFF800000> : vector<2x1xf32>
    %7 = vector.multi_reduction <maximumf>, %6, %cst_4 [1] : vector<2x8x1xf32> to vector<2x1xf32>
    %8 = vector.shape_cast %7 : vector<2x1xf32> to vector<2x1x1xf32>
    %9 = vector.broadcast %8 : vector<2x1x1xf32> to vector<2x8x1xf32>
    %10 = arith.subf %6, %9 : vector<2x8x1xf32>
    %11 = math.exp %10 : vector<2x8x1xf32>
    %cst_5 = arith.constant dense<0.000000e+00> : vector<2x1xf32>
    %12 = vector.multi_reduction <add>, %11, %cst_5 [1] : vector<2x8x1xf32> to vector<2x1xf32>
    %13 = vector.broadcast %11 : vector<2x8x1xf32> to vector<2x8x32xf32>
    %14 = arith.mulf %13, %0 : vector<2x8x32xf32>
    %cst_6 = arith.constant dense<0.000000e+00> : vector<2x32xf32>
    %15 = vector.multi_reduction <add>, %14, %cst_6 [1] : vector<2x8x32xf32> to vector<2x32xf32>
    %16 = tpu.reciprocal %12 {approx = true} : vector<2x1xf32> -> vector<2x1xf32>
    %17 = vector.broadcast %16 : vector<2x1xf32> to vector<2x32xf32>
    %18 = arith.mulf %15, %17 : vector<2x32xf32>
    %c0_7 = arith.constant 0 : index
    %c0_8 = arith.constant 0 : index
    %19 = vector.load %arg3[%c0_7, %c0_8] : memref<2x32xf32, #tpu.memory_space<vmem>>, vector<2x32xf32>
    tpu.vector_store %arg3[%c0_7, %c0_8], %18 {strides = array<i32>} : memref<2x32xf32, #tpu.memory_space<vmem>>, vector<2x32xf32>,
    return
  }
  func.func @transform_0(%arg0: i32) -> (i32, i32, i32) {
    %c0_i32 = arith.constant 0 : i32
    %c0_i32_0 = arith.constant 0 : i32
    %c0_i32_1 = arith.constant 0 : i32
    return %arg0, %c0_i32, %c0_i32_0 : i32, i32, i32
  }
  func.func @transform_1(%arg0: i32) -> (i32, i32) {
    %c0_i32 = arith.constant 0 : i32
    %c0_i32_0 = arith.constant 0 : i32
    return %arg0, %c0_i32 : i32, i32
  }
  func.func @transform_2(%arg0: i32) -> (i32, i32) {
    %c0_i32 = arith.constant 0 : i32
    %c0_i32_0 = arith.constant 0 : i32
    return %arg0, %c0_i32 : i32, i32
  }
}

</mosaic_0001>

<llo_original>
// kernel: tpu_custom_call.1
$region0: #{tpu_custom_call.1}
  #allocation0 [shape = 'u32[]', space=smem, size = 0x4, offset = 0x4, fixed_abs, tag = 'smem constant byte address 0x4 - core index']
  #allocation1 [shape = 'u32[144,128]{1,0:T(1,128)}', space=vmem, size = 0x12000, scoped, tag = 'internal scratch']
  %s0 = inlined_call_operand.hbm [shape: f32[2,8,32], index: 0, kind: input, shape index: {}]
  %s1 = inlined_call_operand.hbm [shape: f32[2,32], index: 1, kind: input, shape index: {}]
  %s2 = inlined_call_operand.hbm [shape: f32[2,32], index: 2, kind: output, shape index: {}]
  %s3 = sld [smem:[#allocation0]]
  $region26: #{tpu_custom_call.1} parent=0
    _
  %s5 = ssub.s32 1, %s3
  %s6 = scalar_select 0, %s5, %s3
  $region1: #{tpu_custom_call.1} parent=0
    #allocation2 [shape = 'u8[8192]{0}', space=vmem, size = 0x2000, scoped, tag = 'input window, operand 0, single buffered']
    #allocation3 [shape = 's32[1]{0}', space=sflag, size = 0x4, scoped, tag = 'scoped memory for tpu_custom_call.1']
    #allocation4 [shape = 's32[1]{0}', space=sflag, size = 0x4, scoped, tag = 'scoped memory for tpu_custom_call.1']
    #allocation5 [shape = 'u8[1024]{0}', space=vmem, size = 0x400, scoped, tag = 'input window, operand 1, single buffered']
    #allocation6 [shape = 's32[1]{0}', space=sflag, size = 0x4, scoped, tag = 'scoped memory for tpu_custom_call.1']
    #allocation7 [shape = 'u8[1024]{0}', space=vmem, size = 0x400, scoped, tag = 'output window, operand 0, single buffered']
    %7 = vsyncpa [#allocation3], 0
    %8 = vsyncpa [#allocation6], 0
    %9 = vsyncpa [#allocation4], 0
    // Predicated region
    $region2: #{tpu_custom_call.1} parent=1 // pred_check
      _
    $region3: #{tpu_custom_call.1} parent=1 // pred_check_branch
      %11 = sbr.rel (0) target = $region5
    $region4: #{tpu_custom_call.1} parent=1 // pred_region
      %s13 = ssub.s32 256, 256
      %14 = vsyncadd [#allocation3], %s13
      %s15 = sshll.u32 [#allocation2], 4
      %s16 = int_to_ptr.vmem [resolvable:$true] %s15
      %21 = dma.hbm_to_vmem [thread:$0]  %s0, 256, %s16, [#allocation3], 128, 128, 8
    $region5: #{tpu_custom_call.1} parent=1 // pred_fallthru
      _
    // Predicated region
    $region6: #{tpu_custom_call.1} parent=1 // pred_check
      _
    $region7: #{tpu_custom_call.1} parent=1 // pred_check_branch
      %23 = sbr.rel (0) target = $region9
    $region8: #{tpu_custom_call.1} parent=1 // pred_region
      %s25 = ssub.s32 32, 32
      %26 = vsyncadd [#allocation6], %s25
      %s28 = sshll.u32 [#allocation5], 4
      %s29 = int_to_ptr.vmem [resolvable:$true] %s28
      %31 = dma.hbm_to_vmem [thread:$0]  %s1, 32, %s29, [#allocation6]
    $region9: #{tpu_custom_call.1} parent=1 // pred_fallthru
      _
    // Predicated region
    $region10: #{tpu_custom_call.1} parent=1 // pred_check
      _
    $region11: #{tpu_custom_call.1} parent=1 // pred_check_branch
      %33 = sbr.rel (0) target = $region13
    $region12: #{tpu_custom_call.1} parent=1 // pred_region
      %34 = dma.done [#allocation3], 256
    $region13: #{tpu_custom_call.1} parent=1 // pred_fallthru
      _
    // Predicated region
    $region14: #{tpu_custom_call.1} parent=1 // pred_check
      _
    $region15: #{tpu_custom_call.1} parent=1 // pred_check_branch
      %36 = sbr.rel (0) target = $region17
    $region16: #{tpu_custom_call.1} parent=1 // pred_region
      %37 = dma.done [#allocation6], 32
    $region17: #{tpu_custom_call.1} parent=1 // pred_fallthru
      _
    %v38 = vld [vmem:[#allocation2] sm:$0xff]
    %v39 = vld [vmem:[#allocation2 + $0x8] sm:$0xff]
    %v40 = vld [vmem:[#allocation5] sm:$0x3]
    %v43 = vunpack.c.l.s4 1966171168
    %v44 = vunpack.c.0.s8 %v43
    %v45 = vlaneseq
    %v46 = vshrl.u32 %v45, 7
    %v47 = vsub.s32 %v44, %v46
    %v48 = vrot.slane %v40, %v47
    %v49 = vcombine.high %v48, %v48
    %v51 = vunpack.c.l.s4 1966171168
    %v52 = vunpack.c.0.s8 %v51
    %v53 = vlaneseq
    %v54 = vshrl.u32 %v53, 7
    %v55 = vsub.s32 %v52, %v54
    %v56 = vrot.slane %v48, %v55
    %v58 = vunpack.c.l.s4 1966171168
    %v59 = vunpack.c.0.s8 %v58
    %v60 = vlaneseq
    %v61 = vshrl.u32 %v60, 7
    %v62 = vsub.s32 %v59, %v61
    %v63 = vrot.slane %v49, %v62
    %v64 = vlaneseq
    %v65 = vshrl.u32 %v64, 7
    %v66 = vsub.s32 0, %v65
    %v67 = vrot.slane %v56, %v66
    %v68 = vlaneseq
    %v69 = vshrl.u32 %v68, 7
    %v70 = vsub.s32 0, %v69
    %v71 = vrot.slane %v63, %v70
    %v74 = vmul.f32 %v38, %v67
    %v75 = vmul.f32 %v39, %v71
    %vm76 = vcmask 261120
    %v77 = vsel %vm76, %v74, 0.0
    %78 = vadd.xlane.f32.xlu0 %v77
    %v79 = vpop.xlane.xlu0 %78
    %v80 = vsel %vm76, %v75, 0.0
    %81 = vadd.xlane.f32.xlu0 %v80
    %v82 = vpop.xlane.xlu0 %81
    %v83 = vrot.slane %v79, 4
    %v84 = vmax.f32 %v79, %v83
    %v85 = vrot.slane %v84, 2
    %v86 = vmax.f32 %v84, %v85
    %v87 = vrot.slane %v86, 1
    %v88 = vmax.f32 %v86, %v87
    %v89 = vrot.slane %v82, 4
    %v90 = vmax.f32 %v82, %v89
    %v91 = vrot.slane %v90, 2
    %v92 = vmax.f32 %v90, %v91
    %v93 = vrot.slane %v92, 1
    %v94 = vmax.f32 %v92, %v93
    %v95 = vsub.f32 %v79, %v88
    %v96 = vsub.f32 %v82, %v94
    %v97 = vmul.f32 %v95, 1.442695
    %v98 = vpow.pop %v97
    %v99 = vmul.f32 %v96, 1.442695
    %v100 = vpow.pop %v99
    %v101 = vrot.slane %v98, 4
    %v102 = vadd.f32 %v98, %v101
    %v103 = vrot.slane %v102, 2
    %v104 = vadd.f32 %v102, %v103
    %v105 = vrot.slane %v104, 1
    %v106 = vadd.f32 %v104, %v105
    %v107 = vrot.slane %v100, 4
    %v108 = vadd.f32 %v100, %v107
    %v109 = vrot.slane %v108, 2
    %v110 = vadd.f32 %v108, %v109
    %v111 = vrot.slane %v110, 1
    %v112 = vadd.f32 %v110, %v111
    %v113 = vmul.f32 %v98, %v38
    %v114 = vmul.f32 %v100, %v39
    %v115 = vsel %vm76, %v113, 0.0
    %v116 = vrot.slane %v115, 4
    %v117 = vadd.f32 %v115, %v116
    %v118 = vrot.slane %v117, 2
    %v119 = vadd.f32 %v117, %v118
    %v120 = vrot.slane %v119, 1
    %v121 = vadd.f32 %v119, %v120
    %v122 = vsel %vm76, %v114, 0.0
    %v123 = vrot.slane %v122, 4
    %v124 = vadd.f32 %v122, %v123
    %v125 = vrot.slane %v124, 2
    %v126 = vadd.f32 %v124, %v125
    %v127 = vrot.slane %v126, 1
    %v128 = vadd.f32 %v126, %v127
    %v129 = vrcp.pop %v106
    %v130 = vrcp.pop %v112
    %v131 = vmul.f32 %v121, %v129
    %v132 = vmul.f32 %v128, %v130
    %vm135 = vcmask 1041409
    %v136 = vsel %vm135, %v132, %v131
    %vm138 = vcmask 254976
    %139 = vst.msk [vmem:[#allocation7] sm:$0x3] %vm138, %v136
    // Predicated region
    $region18: #{tpu_custom_call.1} parent=1 // pred_check
      _
    $region19: #{tpu_custom_call.1} parent=1 // pred_check_branch
      %141 = sbr.rel (0) target = $region21
    $region20: #{tpu_custom_call.1} parent=1 // pred_region
      %s143 = ssub.s32 32, 32
      %144 = vsyncadd [#allocation4], %s143
      %s146 = sshll.u32 [#allocation7], 4
      %s147 = int_to_ptr.vmem [resolvable:$true] %s146
      %149 = dma.vmem_to_hbm [thread:$0]  %s147, 32, %s2, [#allocation4]
    $region21: #{tpu_custom_call.1} parent=1 // pred_fallthru
      _
    // Predicated region
    $region22: #{tpu_custom_call.1} parent=1 // pred_check
      _
    $region23: #{tpu_custom_call.1} parent=1 // pred_check_branch
      %151 = sbr.rel (0) target = $region25
    $region24: #{tpu_custom_call.1} parent=1 // pred_region
      %152 = dma.done [#allocation4], 32
    $region25: #{tpu_custom_call.1} parent=1 // pred_fallthru
      _
    %153 = vsyncpa [#allocation3], 1
    %154 = vsyncpa [#allocation6], 1
    %155 = vsyncpa [#allocation4], 1

</llo_original>
